<compile_context>
chip_gen: v5e
topology: v5e:2x2
jax: 0.10.0
libtpu: 0.0.40
codegen_flags: <defaults>
</compile_context>

<pallas_src>
import functools

import jax
import jax.numpy as jnp
from jax import lax
from jax.experimental import pallas as pl
from jax.experimental.pallas import tpu as pltpu

EPS = 1e-5
LANE = 128
SUBLANE_BF16 = 16


def _round_up(x, m):
    return (x + m - 1) // m * m


def _generator_kernel(z_ref,
                      w1_ref, g1_ref, be1_ref,
                      w2_ref, g2_ref, be2_ref,
                      w3_ref, b3_ref,
                      out_ref,
                      *, batch: int):
    """Fused forward pass. All refs are whole-array VMEM blocks.

    z_ref: (Bp, Kp) bf16, rows >= batch and cols >= latent_dim are zero.
    w*:    bf16, stored (in, out). g*/be*/b3: f32 row vectors (1, F).
    """
    inv_b = 1.0 / float(batch)
    bp = z_ref.shape[0]

    # Mask of real (non-padded) batch rows, used to re-zero padded rows after
    # each BN+ReLU so the next layer's batch statistics stay exact.
    row_ids = lax.broadcasted_iota(jnp.int32, (bp, 1), 0)
    row_mask = (row_ids < batch).astype(jnp.float32)

    def bn_relu_bf16(h, gamma, beta):
        # Padded rows of h are exactly zero, so plain sums over all Bp rows
        # equal sums over the real batch; divide by the true batch size.
        mu = jnp.sum(h, axis=0, keepdims=True) * inv_b
        ex2 = jnp.sum(h * h, axis=0, keepdims=True) * inv_b
        var = jnp.maximum(ex2 - mu * mu, 0.0)      # biased var, clamped >= 0
        scale = gamma * lax.rsqrt(var + EPS)       # folded gamma / sqrt(var+eps)
        shift = beta - mu * scale
        # One fused pass: FMA + ReLU + pad-row mask + cast to the next
        # matmul's bf16 operand dtype (no separate f32 copy stays live).
        return (jnp.maximum(h * scale + shift, 0.0) * row_mask).astype(jnp.bfloat16)

    # Linear(latent, 512) [bias folded into BN] -> BN -> ReLU
    h1 = jnp.dot(z_ref[...], w1_ref[...], preferred_element_type=jnp.float32)
    h1 = bn_relu_bf16(h1, g1_ref[...], be1_ref[...])

    # Linear(512, 256) [bias folded into BN] -> BN -> ReLU
    h2 = jnp.dot(h1, w2_ref[...], preferred_element_type=jnp.float32)
    h2 = bn_relu_bf16(h2, g2_ref[...], be2_ref[...])

    # Linear(256, out_dim_padded) + bias  (lane-dense padded output slab)
    out = jnp.dot(h2, w3_ref[...], preferred_element_type=jnp.float32) + b3_ref[...]
    out_ref[...] = out.astype(out_ref.dtype)


def dcgan_generator(z, kparams):
    """Forward pass. z: (B, latent_dim) f32; kparams from prepare_params()."""
    B, latent_dim = z.shape
    out_dim = kparams["out_dim"]

    bp = _round_up(max(B, 1), SUBLANE_BF16)  # bf16 sublane-aligned batch rows
    kp = kparams["w1"].shape[0]              # lane-padded latent dim
    np_ = kparams["w3"].shape[1]             # lane-padded output dim

    # Zero-pad z and pre-cast to bf16 (the matmul operand dtype): padded
    # rows/cols contribute nothing (pre-BN biases are folded away) and BN
    # stats are normalized by the true batch size inside the kernel.
    z_p = (jnp.zeros((bp, kp), jnp.bfloat16)
           .at[:B, :latent_dim].set(z.astype(jnp.bfloat16)))

    args = (z_p,
            kparams["w1"], kparams["g1"], kparams["be1"],
            kparams["w2"], kparams["g2"], kparams["be2"],
            kparams["w3"], kparams["b3"])

    # Live-set VMEM estimate: bf16 z slab, weights/vectors, per-hidden-layer
    # f32 matmul output + bf16 bn_relu result, f32 output compute + out block.
    w_bytes = sum(int(a.size) * a.dtype.itemsize for a in args[1:])
    z_bytes = bp * kp * 2
    act_bytes = bp * (512 + 256) * (4 + 2)
    out_bytes = bp * np_ * 4 * 2
    need = z_bytes + w_bytes + act_bytes + out_bytes
    try:
        vmem_cap = int(pltpu.get_tpu_info().vmem_capacity_bytes)
    except Exception:  # pragma: no cover - conservative fallback
        vmem_cap = 64 * 1024 * 1024
    # >= 16 MiB headroom for compiler-internal scratch; floor at 32 MiB.
    vmem_limit = int(min(max(2 * need, 32 * 1024 * 1024),
                         vmem_cap - 16 * 1024 * 1024))

    flops = 2 * bp * (kp * 512 + 512 * 256 + 256 * np_)
    cost = pl.CostEstimate(
        flops=flops,
        transcendentals=512 + 256,                       # the two rsqrt rows
        bytes_accessed=z_bytes + w_bytes + bp * np_ * 4)

    vmem = pl.BlockSpec(memory_space=pltpu.MemorySpace.VMEM)
    out_p = pl.pallas_call(
        functools.partial(_generator_kernel, batch=B),
        out_shape=jax.ShapeDtypeStruct((bp, np_), jnp.float32),
        in_specs=[vmem] * len(args),
        out_specs=vmem,
        compiler_params=pltpu.CompilerParams(vmem_limit_bytes=vmem_limit),
        cost_estimate=cost,
    )(*args)
    return out_p[:B, :out_dim]


def init_params(key, latent_dim, out_dim):
    """PyTorch-style f32 parameters. Linear weights stored (in, out), i.e.
    transposed relative to torch; BN gamma=1, beta=0 (default init)."""
    ks = jax.random.split(key, 6)

    def linear(kw, kb, fan_in, fan_out):
        bound = 1.0 / jnp.sqrt(fan_in)
        w = jax.random.uniform(kw, (fan_in, fan_out), jnp.float32, -bound, bound)
        b = jax.random.uniform(kb, (1, fan_out), jnp.float32, -bound, bound)
        return w, b

    w1, b1 = linear(ks[0], ks[1], latent_dim, 512)
    w2, b2 = linear(ks[2], ks[3], 512, 256)
    w3, b3 = linear(ks[4], ks[5], 256, out_dim)
    return dict(
        w1=w1, b1=b1, w2=w2, b2=b2, w3=w3, b3=b3,
        g1=jnp.ones((1, 512), jnp.float32), be1=jnp.zeros((1, 512), jnp.float32),
        g2=jnp.ones((1, 256), jnp.float32), be2=jnp.zeros((1, 256), jnp.float32),
    )


def prepare_params(p, latent_dim, out_dim):
    """Kernel-ready parameters: bf16 matmul weights, lane padding of the
    contraction/output dims, pre-BN biases dropped (exact no-ops under
    training-mode BatchNorm)."""
    kp = _round_up(latent_dim, LANE)
    np_ = _round_up(out_dim, LANE)
    w1 = (jnp.zeros((kp, 512), jnp.float32).at[:latent_dim].set(p["w1"])
          .astype(jnp.bfloat16))
    w2 = p["w2"].astype(jnp.bfloat16)
    w3 = (jnp.zeros((256, np_), jnp.float32).at[:, :out_dim].set(p["w3"])
          .astype(jnp.bfloat16))
    b3 = jnp.zeros((1, np_), jnp.float32).at[:, :out_dim].set(p["b3"])
    return dict(w1=w1, w2=w2, w3=w3, b3=b3,
                g1=p["g1"], be1=p["be1"], g2=p["g2"], be2=p["be2"],
                latent_dim=latent_dim, out_dim=out_dim)


def reference_f32(z, p):
    """Pure-JAX f32 reference with the exact PyTorch module semantics
    (all Linear biases, training-mode BatchNorm1d, biased variance)."""
    def bn_relu(h, g, b):
        mu = h.mean(0, keepdims=True)
        var = ((h - mu) ** 2).mean(0, keepdims=True)
        return jnp.maximum((h - mu) / jnp.sqrt(var + EPS) * g + b, 0.0)

    h = bn_relu(z @ p["w1"] + p["b1"], p["g1"], p["be1"])
    h = bn_relu(h @ p["w2"] + p["b2"], p["g2"], p["be2"])
    return h @ p["w3"] + p["b3"]


def reference_bf16(z, p):
    """Reference mirroring the kernel's matmul numerics (bf16 operands, f32
    accumulation) for the tight correctness check. b1/b2 omitted (cancel)."""
    def dot(a, b):
        return jnp.dot(a.astype(jnp.bfloat16), b.astype(jnp.bfloat16),
                       preferred_element_type=jnp.float32)

    def bn_relu(h, g, b):
        mu = h.mean(0, keepdims=True)
        var = ((h - mu) ** 2).mean(0, keepdims=True)
        return jnp.maximum((h - mu) * lax.rsqrt(var + EPS) * g + b,
                           0.0).astype(jnp.bfloat16)

    h = bn_relu(dot(z, p["w1"]), p["g1"], p["be1"])
    h = bn_relu(dot(h, p["w2"]), p["g2"], p["be2"])
    return dot(h, p["w3"]) + p["b3"]


if __name__ == "__main__":
    B, LATENT_DIM, OUT_DIM = 8, 32, 16

    key = jax.random.PRNGKey(0)
    kz, kp_ = jax.random.split(key)
    z = jax.random.normal(kz, (B, LATENT_DIM), jnp.float32)

    params_f32 = init_params(kp_, LATENT_DIM, OUT_DIM)
    kparams = prepare_params(params_f32, LATENT_DIM, OUT_DIM)

    out = jax.block_until_ready(dcgan_generator(z, kparams))
    assert out.shape == (B, OUT_DIM)

    ref_b = reference_bf16(z, params_f32)
    ref_f = reference_f32(z, params_f32)
    assert jnp.allclose(out, ref_b, atol=5e-3, rtol=5e-3), (
        "bf16-ref mismatch, max abs diff = %g" % float(jnp.max(jnp.abs(out - ref_b))))
    assert jnp.allclose(out, ref_f, atol=5e-2, rtol=5e-2), (
        "f32-ref mismatch, max abs diff = %g" % float(jnp.max(jnp.abs(out - ref_f))))
    print("KERNEL_OK")
</pallas_src>

<mosaic_0001>
module attributes {stable_mosaic.version = 11 : i64} {
  func.func @_generator_kernel(%arg0: memref<16x128xbf16, #tpu.memory_space<vmem>>, %arg1: memref<128x512xbf16, #tpu.memory_space<vmem>>, %arg2: memref<1x512xf32, #tpu.memory_space<vmem>>, %arg3: memref<1x512xf32, #tpu.memory_space<vmem>>, %arg4: memref<512x256xbf16, #tpu.memory_space<vmem>>, %arg5: memref<1x256xf32, #tpu.memory_space<vmem>>, %arg6: memref<1x256xf32, #tpu.memory_space<vmem>>, %arg7: memref<256x128xbf16, #tpu.memory_space<vmem>>, %arg8: memref<1x128xf32, #tpu.memory_space<vmem>>, %arg9: memref<16x128xf32, #tpu.memory_space<vmem>>) attributes {dimension_semantics = [], scalar_prefetch = 0 : i64, scratch_operands = 0 : i64, tpu.core_type = #tpu.core_type<tc>} {
    %0 = tpu.iota {dimensions = array<i32: 0>} : vector<16x1xi32>
    %c8_i32 = arith.constant 8 : i32
    %1 = vector.broadcast %c8_i32 : i32 to vector<16x1xi32>
    %2 = arith.cmpi slt, %0, %1 : vector<16x1xi32>
    %3 = arith.extui %2 : vector<16x1xi1> to vector<16x1xi32>
    %4 = arith.sitofp %3 : vector<16x1xi32> to vector<16x1xf32>
    %c0 = arith.constant 0 : index
    %c0_0 = arith.constant 0 : index
    %5 = vector.load %arg0[%c0, %c0_0] : memref<16x128xbf16, #tpu.memory_space<vmem>>, vector<16x128xbf16>
    %c0_1 = arith.constant 0 : index
    %c0_2 = arith.constant 0 : index
    %6 = vector.load %arg1[%c0_1, %c0_2] : memref<128x512xbf16, #tpu.memory_space<vmem>>, vector<128x512xbf16>
    %cst = arith.constant dense<0.000000e+00> : vector<16x512xf32>
    %7 = tpu.matmul %5, %6, %cst {dimension_numbers = #tpu.dot_dimension_numbers<[1], [0], [0], [1], [0, 0, 1, 1], [], []>} : vector<16x128xbf16>, vector<128x512xbf16>, vector<16x512xf32> -> vector<16x512xf32>
    %c0_3 = arith.constant 0 : index
    %c0_4 = arith.constant 0 : index
    %8 = vector.load %arg2[%c0_3, %c0_4] : memref<1x512xf32, #tpu.memory_space<vmem>>, vector<1x512xf32>
    %c0_5 = arith.constant 0 : index
    %c0_6 = arith.constant 0 : index
    %9 = vector.load %arg3[%c0_5, %c0_6] : memref<1x512xf32, #tpu.memory_space<vmem>>, vector<1x512xf32>
    %cst_7 = arith.constant dense<0.000000e+00> : vector<512xf32>
    %10 = vector.multi_reduction <add>, %7, %cst_7 [0] : vector<16x512xf32> to vector<512xf32>
    %11 = vector.shape_cast %10 : vector<512xf32> to vector<1x512xf32>
    %cst_8 = arith.constant 1.250000e-01 : f32
    %12 = vector.broadcast %cst_8 : f32 to vector<1x512xf32>
    %13 = arith.mulf %11, %12 : vector<1x512xf32>
    %14 = arith.mulf %7, %7 : vector<16x512xf32>
    %cst_9 = arith.constant dense<0.000000e+00> : vector<512xf32>
    %15 = vector.multi_reduction <add>, %14, %cst_9 [0] : vector<16x512xf32> to vector<512xf32>
    %16 = vector.shape_cast %15 : vector<512xf32> to vector<1x512xf32>
    %cst_10 = arith.constant 1.250000e-01 : f32
    %17 = vector.broadcast %cst_10 : f32 to vector<1x512xf32>
    %18 = arith.mulf %16, %17 : vector<1x512xf32>
    %19 = arith.mulf %13, %13 : vector<1x512xf32>
    %20 = arith.subf %18, %19 : vector<1x512xf32>
    %cst_11 = arith.constant 0.000000e+00 : f32
    %21 = vector.broadcast %cst_11 : f32 to vector<1x512xf32>
    %22 = arith.maximumf %20, %21 : vector<1x512xf32>
    %cst_12 = arith.constant 9.99999974E-6 : f32
    %23 = vector.broadcast %cst_12 : f32 to vector<1x512xf32>
    %24 = arith.addf %22, %23 : vector<1x512xf32>
    %25 = math.rsqrt %24 : vector<1x512xf32>
    %26 = arith.mulf %8, %25 : vector<1x512xf32>
    %27 = arith.mulf %13, %26 : vector<1x512xf32>
    %28 = arith.subf %9, %27 : vector<1x512xf32>
    %29 = vector.broadcast %26 : vector<1x512xf32> to vector<16x512xf32>
    %30 = arith.mulf %7, %29 : vector<16x512xf32>
    %31 = vector.broadcast %28 : vector<1x512xf32> to vector<16x512xf32>
    %32 = arith.addf %30, %31 : vector<16x512xf32>
    %cst_13 = arith.constant 0.000000e+00 : f32
    %33 = vector.broadcast %cst_13 : f32 to vector<16x512xf32>
    %34 = arith.maximumf %32, %33 : vector<16x512xf32>
    %35 = vector.broadcast %4 : vector<16x1xf32> to vector<16x512xf32>
    %36 = arith.mulf %34, %35 : vector<16x512xf32>
    %37 = arith.truncf %36 : vector<16x512xf32> to vector<16x512xbf16>
    %c0_14 = arith.constant 0 : index
    %c0_15 = arith.constant 0 : index
    %38 = vector.load %arg4[%c0_14, %c0_15] : memref<512x256xbf16, #tpu.memory_space<vmem>>, vector<512x256xbf16>
    %cst_16 = arith.constant dense<0.000000e+00> : vector<16x256xf32>
    %39 = tpu.matmul %37, %38, %cst_16 {dimension_numbers = #tpu.dot_dimension_numbers<[1], [0], [0], [1], [0, 0, 1, 1], [], []>} : vector<16x512xbf16>, vector<512x256xbf16>, vector<16x256xf32> -> vector<16x256xf32>
    %c0_17 = arith.constant 0 : index
    %c0_18 = arith.constant 0 : index
    %40 = vector.load %arg5[%c0_17, %c0_18] : memref<1x256xf32, #tpu.memory_space<vmem>>, vector<1x256xf32>
    %c0_19 = arith.constant 0 : index
    %c0_20 = arith.constant 0 : index
    %41 = vector.load %arg6[%c0_19, %c0_20] : memref<1x256xf32, #tpu.memory_space<vmem>>, vector<1x256xf32>
    %cst_21 = arith.constant dense<0.000000e+00> : vector<256xf32>
    %42 = vector.multi_reduction <add>, %39, %cst_21 [0] : vector<16x256xf32> to vector<256xf32>
    %43 = vector.shape_cast %42 : vector<256xf32> to vector<1x256xf32>
    %cst_22 = arith.constant 1.250000e-01 : f32
    %44 = vector.broadcast %cst_22 : f32 to vector<1x256xf32>
    %45 = arith.mulf %43, %44 : vector<1x256xf32>
    %46 = arith.mulf %39, %39 : vector<16x256xf32>
    %cst_23 = arith.constant dense<0.000000e+00> : vector<256xf32>
    %47 = vector.multi_reduction <add>, %46, %cst_23 [0] : vector<16x256xf32> to vector<256xf32>
    %48 = vector.shape_cast %47 : vector<256xf32> to vector<1x256xf32>
    %cst_24 = arith.constant 1.250000e-01 : f32
    %49 = vector.broadcast %cst_24 : f32 to vector<1x256xf32>
    %50 = arith.mulf %48, %49 : vector<1x256xf32>
    %51 = arith.mulf %45, %45 : vector<1x256xf32>
    %52 = arith.subf %50, %51 : vector<1x256xf32>
    %cst_25 = arith.constant 0.000000e+00 : f32
    %53 = vector.broadcast %cst_25 : f32 to vector<1x256xf32>
    %54 = arith.maximumf %52, %53 : vector<1x256xf32>
    %cst_26 = arith.constant 9.99999974E-6 : f32
    %55 = vector.broadcast %cst_26 : f32 to vector<1x256xf32>
    %56 = arith.addf %54, %55 : vector<1x256xf32>
    %57 = math.rsqrt %56 : vector<1x256xf32>
    %58 = arith.mulf %40, %57 : vector<1x256xf32>
    %59 = arith.mulf %45, %58 : vector<1x256xf32>
    %60 = arith.subf %41, %59 : vector<1x256xf32>
    %61 = vector.broadcast %58 : vector<1x256xf32> to vector<16x256xf32>
    %62 = arith.mulf %39, %61 : vector<16x256xf32>
    %63 = vector.broadcast %60 : vector<1x256xf32> to vector<16x256xf32>
    %64 = arith.addf %62, %63 : vector<16x256xf32>
    %cst_27 = arith.constant 0.000000e+00 : f32
    %65 = vector.broadcast %cst_27 : f32 to vector<16x256xf32>
    %66 = arith.maximumf %64, %65 : vector<16x256xf32>
    %67 = vector.broadcast %4 : vector<16x1xf32> to vector<16x256xf32>
    %68 = arith.mulf %66, %67 : vector<16x256xf32>
    %69 = arith.truncf %68 : vector<16x256xf32> to vector<16x256xbf16>
    %c0_28 = arith.constant 0 : index
    %c0_29 = arith.constant 0 : index
    %70 = vector.load %arg7[%c0_28, %c0_29] : memref<256x128xbf16, #tpu.memory_space<vmem>>, vector<256x128xbf16>
    %cst_30 = arith.constant dense<0.000000e+00> : vector<16x128xf32>
    %71 = tpu.matmul %69, %70, %cst_30 {dimension_numbers = #tpu.dot_dimension_numbers<[1], [0], [0], [1], [0, 0, 1, 1], [], []>} : vector<16x256xbf16>, vector<256x128xbf16>, vector<16x128xf32> -> vector<16x128xf32>
    %c0_31 = arith.constant 0 : index
    %c0_32 = arith.constant 0 : index
    %72 = vector.load %arg8[%c0_31, %c0_32] : memref<1x128xf32, #tpu.memory_space<vmem>>, vector<1x128xf32>
    %73 = vector.broadcast %72 : vector<1x128xf32> to vector<16x128xf32>
    %74 = arith.addf %71, %73 : vector<16x128xf32>
    %c0_33 = arith.constant 0 : index
    %c0_34 = arith.constant 0 : index
    %75 = vector.load %arg9[%c0_33, %c0_34] : memref<16x128xf32, #tpu.memory_space<vmem>>, vector<16x128xf32>
    tpu.vector_store %arg9[%c0_33, %c0_34], %74 {strides = array<i32>} : memref<16x128xf32, #tpu.memory_space<vmem>>, vector<16x128xf32>,
    return
  }
}

</mosaic_0001>

<llo_original>
// kernel: tpu_custom_call.1
$region0: #{tpu_custom_call.1}
  #allocation0 [shape = 'u32[]', space=smem, size = 0x4, offset = 0x4, fixed_abs, tag = 'smem constant byte address 0x4 - core index']
  #allocation1 [shape = 'u32[72,128]{1,0:T(1,128)}', space=vmem, size = 0x9000, scoped, tag = 'internal scratch']
  %s0 = inlined_call_operand.hbm [shape: bf16[16,128], index: 0, kind: input, shape index: {}]
  %s1 = inlined_call_operand.hbm [shape: bf16[128,512], index: 1, kind: input, shape index: {}]
  %s2 = inlined_call_operand.hbm [shape: f32[1,512], index: 2, kind: input, shape index: {}]
  %s3 = inlined_call_operand.hbm [shape: f32[1,512], index: 3, kind: input, shape index: {}]
  %s4 = inlined_call_operand.hbm [shape: bf16[512,256], index: 4, kind: input, shape index: {}]
  %s5 = inlined_call_operand.vmem [shape: f32[1,256], index: 5, kind: input, shape index: {}]
  %s6 = inlined_call_operand.vmem [shape: f32[1,256], index: 6, kind: input, shape index: {}]
  %s7 = inlined_call_operand.hbm [shape: bf16[256,128], index: 7, kind: input, shape index: {}]
  %s8 = inlined_call_operand.vmem [shape: f32[1,128], index: 8, kind: input, shape index: {}]
  %s9 = inlined_call_operand.hbm [shape: f32[16,128], index: 9, kind: output, shape index: {}]
  %s10 = sld [smem:[#allocation0]]
  $region70: #{tpu_custom_call.1} parent=0
    _
  %s12 = ssub.s32 1, %s10
  %s13 = scalar_select 0, %s12, %s10
  $region1: #{tpu_custom_call.1} parent=0
    #allocation2 [shape = 'u8[4096]{0}', space=vmem, size = 0x1000, scoped, tag = 'input window, operand 0, single buffered']
    #allocation3 [shape = 's32[1]{0}', space=sflag, size = 0x4, scoped, tag = 'scoped memory for tpu_custom_call.1']
    #allocation4 [shape = 's32[1]{0}', space=sflag, size = 0x4, scoped, tag = 'scoped memory for tpu_custom_call.1']
    #allocation5 [shape = 'u8[131072]{0}', space=vmem, size = 0x20000, scoped, tag = 'input window, operand 1, single buffered']
    #allocation6 [shape = 's32[1]{0}', space=sflag, size = 0x4, scoped, tag = 'scoped memory for tpu_custom_call.1']
    #allocation7 [shape = 'u8[2048]{0}', space=vmem, size = 0x800, scoped, tag = 'input window, operand 2, single buffered']
    #allocation8 [shape = 'u8[2048]{0}', space=vmem, size = 0x800, scoped, tag = 'input window, operand 3, single buffered']
    #allocation9 [shape = 's32[1]{0}', space=sflag, size = 0x4, scoped, tag = 'scoped memory for tpu_custom_call.1']
    #allocation10 [shape = 'u8[262144]{0}', space=vmem, size = 0x40000, scoped, tag = 'input window, operand 4, single buffered']
    #allocation11 [shape = 'u8[65536]{0}', space=vmem, size = 0x10000, scoped, tag = 'input window, operand 7, single buffered']
    #allocation12 [shape = 's32[1]{0}', space=sflag, size = 0x4, scoped, tag = 'scoped memory for tpu_custom_call.1']
    #allocation13 [shape = 'u8[8192]{0}', space=vmem, size = 0x2000, scoped, tag = 'output window, operand 0, single buffered']
    %14 = vsyncpa [#allocation3], 0
    %15 = vsyncpa [#allocation6], 0
    %16 = vsyncpa [#allocation9], 0
    %17 = vsyncpa [#allocation12], 0
    %18 = vsyncpa [#allocation4], 0
    // Predicated region
    $region2: #{tpu_custom_call.1} parent=1 // pred_check
      _
    $region3: #{tpu_custom_call.1} parent=1 // pred_check_branch
      %20 = sbr.rel (0) target = $region5
    $region4: #{tpu_custom_call.1} parent=1 // pred_region
      %22 = vsyncadd [#allocation3], 0
      %s23 = sshll.u32 %s0, 4
      %s24 = int_to_ptr.hbm [resolvable:$true] %s23
      %s25 = sshll.u32 [#allocation2], 4
      %s26 = int_to_ptr.vmem [resolvable:$true] %s25
      %31 = dma.hbm_to_vmem [thread:$0]  %s24, 128, %s26, [#allocation3], 64, 64, 4
    $region5: #{tpu_custom_call.1} parent=1 // pred_fallthru
      _
    // Predicated region
    $region6: #{tpu_custom_call.1} parent=1 // pred_check
      _
    $region7: #{tpu_custom_call.1} parent=1 // pred_check_branch
      %33 = sbr.rel (0) target = $region9
    $region8: #{tpu_custom_call.1} parent=1 // pred_region
      %35 = vsyncadd [#allocation6], 0
      %s36 = sshll.u32 %s1, 4
      %s37 = int_to_ptr.hbm [resolvable:$true] %s36
      %s38 = sshll.u32 [#allocation5], 4
      %s39 = int_to_ptr.vmem [resolvable:$true] %s38
      %44 = dma.hbm_to_vmem [thread:$0]  %s37, 4096, %s39, [#allocation6], 256, 256, 16
    $region9: #{tpu_custom_call.1} parent=1 // pred_fallthru
      _
    // Predicated region
    $region10: #{tpu_custom_call.1} parent=1 // pred_check
      _
    $region11: #{tpu_custom_call.1} parent=1 // pred_check_branch
      %46 = sbr.rel (0) target = $region13
    $region12: #{tpu_custom_call.1} parent=1 // pred_region
      %48 = vsyncadd [#allocation6], 0
      %s50 = sshll.u32 %s2, 4
      %s51 = int_to_ptr.hbm [resolvable:$true] %s50
      %s52 = sshll.u32 [#allocation7], 4
      %s53 = int_to_ptr.vmem [resolvable:$true] %s52
      %55 = dma.hbm_to_vmem [thread:$0]  %s51, 64, %s53, [#allocation6]
    $region13: #{tpu_custom_call.1} parent=1 // pred_fallthru
      _
    // Predicated region
    $region14: #{tpu_custom_call.1} parent=1 // pred_check
      _
    $region15: #{tpu_custom_call.1} parent=1 // pred_check_branch
      %57 = sbr.rel (0) target = $region17
    $region16: #{tpu_custom_call.1} parent=1 // pred_region
      %59 = vsyncadd [#allocation9], 0
      %s61 = sshll.u32 %s3, 4
      %s62 = int_to_ptr.hbm [resolvable:$true] %s61
      %s63 = sshll.u32 [#allocation8], 4
      %s64 = int_to_ptr.vmem [resolvable:$true] %s63
      %66 = dma.hbm_to_vmem [thread:$0]  %s62, 64, %s64, [#allocation9]
    $region17: #{tpu_custom_call.1} parent=1 // pred_fallthru
      _
    // Predicated region
    $region18: #{tpu_custom_call.1} parent=1 // pred_check
      _
    $region19: #{tpu_custom_call.1} parent=1 // pred_check_branch
      %68 = sbr.rel (0) target = $region21
    $region20: #{tpu_custom_call.1} parent=1 // pred_region
      %70 = vsyncadd [#allocation9], 0
      %s71 = sshll.u32 %s4, 4
      %s72 = int_to_ptr.hbm [resolvable:$true] %s71
      %s73 = sshll.u32 [#allocation10], 4
      %s74 = int_to_ptr.vmem [resolvable:$true] %s73
      %79 = dma.hbm_to_vmem [thread:$0]  %s72, 8192, %s74, [#allocation9], 128, 128, 8
    $region21: #{tpu_custom_call.1} parent=1 // pred_fallthru
      _
    // Predicated region
    $region22: #{tpu_custom_call.1} parent=1 // pred_check
      _
    $region23: #{tpu_custom_call.1} parent=1 // pred_check_branch
      %81 = sbr.rel (0) target = $region25
    $region24: #{tpu_custom_call.1} parent=1 // pred_region
      _
    $region25: #{tpu_custom_call.1} parent=1 // pred_fallthru
      _
    // Predicated region
    $region26: #{tpu_custom_call.1} parent=1 // pred_check
      _
    $region27: #{tpu_custom_call.1} parent=1 // pred_check_branch
      %83 = sbr.rel (0) target = $region29
    $region28: #{tpu_custom_call.1} parent=1 // pred_region
      _
    $region29: #{tpu_custom_call.1} parent=1 // pred_fallthru
      _
    // Predicated region
    $region30: #{tpu_custom_call.1} parent=1 // pred_check
      _
    $region31: #{tpu_custom_call.1} parent=1 // pred_check_branch
      %85 = sbr.rel (0) target = $region33
    $region32: #{tpu_custom_call.1} parent=1 // pred_region
      %87 = vsyncadd [#allocation12], 0
      %s88 = sshll.u32 %s7, 4
      %s89 = int_to_ptr.hbm [resolvable:$true] %s88
      %s90 = sshll.u32 [#allocation11], 4
      %s91 = int_to_ptr.vmem [resolvable:$true] %s90
      %96 = dma.hbm_to_vmem [thread:$0]  %s89, 2048, %s91, [#allocation12], 64, 64, 4
    $region33: #{tpu_custom_call.1} parent=1 // pred_fallthru
      _
    // Predicated region
    $region34: #{tpu_custom_call.1} parent=1 // pred_check
      _
    $region35: #{tpu_custom_call.1} parent=1 // pred_check_branch
      %98 = sbr.rel (0) target = $region37
    $region36: #{tpu_custom_call.1} parent=1 // pred_region
      _
    $region37: #{tpu_custom_call.1} parent=1 // pred_fallthru
      _
    // Predicated region
    $region38: #{tpu_custom_call.1} parent=1 // pred_check
      _
    $region39: #{tpu_custom_call.1} parent=1 // pred_check_branch
      %100 = sbr.rel (0) target = $region41
    $region40: #{tpu_custom_call.1} parent=1 // pred_region
      %102 = dma.done [#allocation3], 128
    $region41: #{tpu_custom_call.1} parent=1 // pred_fallthru
      _
    // Predicated region
    $region42: #{tpu_custom_call.1} parent=1 // pred_check
      _
    $region43: #{tpu_custom_call.1} parent=1 // pred_check_branch
      %104 = sbr.rel (0) target = $region45
    $region44: #{tpu_custom_call.1} parent=1 // pred_region
      %106 = dma.done [#allocation6], 4096
    $region45: #{tpu_custom_call.1} parent=1 // pred_fallthru
      _
    // Predicated region
    $region46: #{tpu_custom_call.1} parent=1 // pred_check
      _
    $region47: #{tpu_custom_call.1} parent=1 // pred_check_branch
      %108 = sbr.rel (0) target = $region49
    $region48: #{tpu_custom_call.1} parent=1 // pred_region
      %110 = dma.done [#allocation6], 64
    $region49: #{tpu_custom_call.1} parent=1 // pred_fallthru
      _
    // Predicated region
    $region50: #{tpu_custom_call.1} parent=1 // pred_check
      _
    $region51: #{tpu_custom_call.1} parent=1 // pred_check_branch
      %112 = sbr.rel (0) target = $region53
    $region52: #{tpu_custom_call.1} parent=1 // pred_region
      %114 = dma.done [#allocation9], 64
    $region53: #{tpu_custom_call.1} parent=1 // pred_fallthru
      _
    // Predicated region
    $region54: #{tpu_custom_call.1} parent=1 // pred_check
      _
    $region55: #{tpu_custom_call.1} parent=1 // pred_check_branch
      %116 = sbr.rel (0) target = $region57
    $region56: #{tpu_custom_call.1} parent=1 // pred_region
      %118 = dma.done [#allocation9], 8192
    $region57: #{tpu_custom_call.1} parent=1 // pred_fallthru
      _
    // Predicated region
    $region58: #{tpu_custom_call.1} parent=1 // pred_check
      _
    $region59: #{tpu_custom_call.1} parent=1 // pred_check_branch
      %120 = sbr.rel (0) target = $region61
    $region60: #{tpu_custom_call.1} parent=1 // pred_region
      %122 = dma.done [#allocation12], 2048
    $region61: #{tpu_custom_call.1} parent=1 // pred_fallthru
      _
    %v123 = vlaneseq
    %v124 = vshrl.u32 %v123, 7
    %v125 = vadd.s32 %v124, 8
    %vm126 = vcmp.lt.s32.totalorder %v124, 8
    %vm127 = vcmp.lt.s32.totalorder %v125, 8
    %v128 = vsel %vm126, 1, 0
    %v129 = vsel %vm127, 1, 0
    %v130 = vcvt.s32.f32 %v128
    %v131 = vcvt.s32.f32 %v129
    %v132 = vld [vmem:[#allocation2] sm:$0xf]
    %v133 = vld [vmem:[#allocation2 + $0x4] sm:$0xf]
    %v134 = vld [vmem:[#allocation5] sm:$0xff]
    %v135 = vld [vmem:[#allocation5 + $0x8] sm:$0xff]
    %v136 = vld [vmem:[#allocation5 + $0x10] sm:$0xff]
    %v137 = vld [vmem:[#allocation5 + $0x18] sm:$0xff]
    %v138 = vld [vmem:[#allocation5 + $0x20] sm:$0xff]
    %v139 = vld [vmem:[#allocation5 + $0x28] sm:$0xff]
    %v140 = vld [vmem:[#allocation5 + $0x30] sm:$0xff]
    %v141 = vld [vmem:[#allocation5 + $0x38] sm:$0xff]
    %v142 = vld [vmem:[#allocation5 + $0x40] sm:$0xff]
    %v143 = vld [vmem:[#allocation5 + $0x48] sm:$0xff]
    %v144 = vld [vmem:[#allocation5 + $0x50] sm:$0xff]
    %v145 = vld [vmem:[#allocation5 + $0x58] sm:$0xff]
    %v146 = vld [vmem:[#allocation5 + $0x60] sm:$0xff]
    %v147 = vld [vmem:[#allocation5 + $0x68] sm:$0xff]
    %v148 = vld [vmem:[#allocation5 + $0x70] sm:$0xff]
    %v149 = vld [vmem:[#allocation5 + $0x78] sm:$0xff]
    %v150 = vld [vmem:[#allocation5 + $0x80] sm:$0xff]
    %v151 = vld [vmem:[#allocation5 + $0x88] sm:$0xff]
    %v152 = vld [vmem:[#allocation5 + $0x90] sm:$0xff]
    %v153 = vld [vmem:[#allocation5 + $0x98] sm:$0xff]
    %v154 = vld [vmem:[#allocation5 + $0xa0] sm:$0xff]
    %v155 = vld [vmem:[#allocation5 + $0xa8] sm:$0xff]
    %v156 = vld [vmem:[#allocation5 + $0xb0] sm:$0xff]
    %v157 = vld [vmem:[#allocation5 + $0xb8] sm:$0xff]
    %v158 = vld [vmem:[#allocation5 + $0xc0] sm:$0xff]
    %v159 = vld [vmem:[#allocation5 + $0xc8] sm:$0xff]
    %v160 = vld [vmem:[#allocation5 + $0xd0] sm:$0xff]
    %v161 = vld [vmem:[#allocation5 + $0xd8] sm:$0xff]
    %v162 = vld [vmem:[#allocation5 + $0xe0] sm:$0xff]
    %v163 = vld [vmem:[#allocation5 + $0xe8] sm:$0xff]
    %v164 = vld [vmem:[#allocation5 + $0xf0] sm:$0xff]
    %v165 = vld [vmem:[#allocation5 + $0xf8] sm:$0xff]
    %v168 = vunpack.c.l.b16 %v132
    %v169 = vunpack.c.l.b16 %v133
    %v170 = vpack.c.b16 %v169, %v168
    %v204 = vunpack.c.l.b16 %v134
    %v205 = vunpack.c.h.b16 %v134
    %v206 = vunpack.c.l.b16 %v135
    %v207 = vunpack.c.h.b16 %v135
    %v208 = vunpack.c.l.b16 %v136
    %v209 = vunpack.c.h.b16 %v136
    %v210 = vunpack.c.l.b16 %v137
    %v211 = vunpack.c.h.b16 %v137
    %v212 = vunpack.c.l.b16 %v138
    %v213 = vunpack.c.h.b16 %v138
    %v214 = vunpack.c.l.b16 %v139
    %v215 = vunpack.c.h.b16 %v139
    %v216 = vunpack.c.l.b16 %v140
    %v217 = vunpack.c.h.b16 %v140
    %v218 = vunpack.c.l.b16 %v141
    %v219 = vunpack.c.h.b16 %v141
    %v220 = vunpack.c.l.b16 %v142
    %v221 = vunpack.c.h.b16 %v142
    %v222 = vunpack.c.l.b16 %v143
    %v223 = vunpack.c.h.b16 %v143
    %v224 = vunpack.c.l.b16 %v144
    %v225 = vunpack.c.h.b16 %v144
    %v226 = vunpack.c.l.b16 %v145
    %v227 = vunpack.c.h.b16 %v145
    %v228 = vunpack.c.l.b16 %v146
    %v229 = vunpack.c.h.b16 %v146
    %v230 = vunpack.c.l.b16 %v147
    %v231 = vunpack.c.h.b16 %v147
    %v232 = vunpack.c.l.b16 %v148
    %v233 = vunpack.c.h.b16 %v148
    %v234 = vunpack.c.l.b16 %v149
    %v235 = vunpack.c.h.b16 %v149
    %v236 = vunpack.c.l.b16 %v150
    %v237 = vunpack.c.h.b16 %v150
    %v238 = vunpack.c.l.b16 %v151
    %v239 = vunpack.c.h.b16 %v151
    %v240 = vunpack.c.l.b16 %v152
    %v241 = vunpack.c.h.b16 %v152
    %v242 = vunpack.c.l.b16 %v153
    %v243 = vunpack.c.h.b16 %v153
    %v244 = vunpack.c.l.b16 %v154
    %v245 = vunpack.c.h.b16 %v154
    %v246 = vunpack.c.l.b16 %v155
    %v247 = vunpack.c.h.b16 %v155
    %v248 = vunpack.c.l.b16 %v156
    %v249 = vunpack.c.h.b16 %v156
    %v250 = vunpack.c.l.b16 %v157
    %v251 = vunpack.c.h.b16 %v157
    %v252 = vunpack.c.l.b16 %v158
    %v253 = vunpack.c.h.b16 %v158
    %v254 = vunpack.c.l.b16 %v159
    %v255 = vunpack.c.h.b16 %v159
    %v256 = vunpack.c.l.b16 %v160
    %v257 = vunpack.c.h.b16 %v160
    %v258 = vunpack.c.l.b16 %v161
    %v259 = vunpack.c.h.b16 %v161
    %v260 = vunpack.c.l.b16 %v162
    %v261 = vunpack.c.h.b16 %v162
    %v262 = vunpack.c.l.b16 %v163
    %v263 = vunpack.c.h.b16 %v163
    %v264 = vunpack.c.l.b16 %v164
    %v265 = vunpack.c.h.b16 %v164
    %v266 = vunpack.c.l.b16 %v165
    %v267 = vunpack.c.h.b16 %v165
    %v268 = vpack.c.b16 %v208, %v204
    %v269 = vpack.c.b16 %v209, %v205
    %v270 = vpack.c.b16 %v210, %v206
    %v271 = vpack.c.b16 %v211, %v207
    %v272 = vpack.c.b16 %v216, %v212
    %v273 = vpack.c.b16 %v217, %v213
    %v274 = vpack.c.b16 %v218, %v214
    %v275 = vpack.c.b16 %v219, %v215
    %v276 = vpack.c.b16 %v224, %v220
    %v277 = vpack.c.b16 %v225, %v221
    %v278 = vpack.c.b16 %v226, %v222
    %v279 = vpack.c.b16 %v227, %v223
    %v280 = vpack.c.b16 %v232, %v228
    %v281 = vpack.c.b16 %v233, %v229
    %v282 = vpack.c.b16 %v234, %v230
    %v283 = vpack.c.b16 %v235, %v231
    %v284 = vpack.c.b16 %v240, %v236
    %v285 = vpack.c.b16 %v241, %v237
    %v286 = vpack.c.b16 %v242, %v238
    %v287 = vpack.c.b16 %v243, %v239
    %v288 = vpack.c.b16 %v248, %v244
    %v289 = vpack.c.b16 %v249, %v245
    %v290 = vpack.c.b16 %v250, %v246
    %v291 = vpack.c.b16 %v251, %v247
    %v292 = vpack.c.b16 %v256, %v252
    %v293 = vpack.c.b16 %v257, %v253
    %v294 = vpack.c.b16 %v258, %v254
    %v295 = vpack.c.b16 %v259, %v255
    %v296 = vpack.c.b16 %v264, %v260
    %v297 = vpack.c.b16 %v265, %v261
    %v298 = vpack.c.b16 %v266, %v262
    %v299 = vpack.c.b16 %v267, %v263
    %332 = vmatpush.bf16.msra.mxu0 %v296
    %333 = vmatpush.bf16.msra.mxu0 %v292
    %334 = vmatpush.bf16.msra.mxu0 %v288
    %335 = vmatpush.bf16.msra.mxu0 %v284
    %336 = vmatpush.bf16.msra.mxu0 %v280
    %337 = vmatpush.bf16.msra.mxu0 %v276
    %338 = vmatpush.bf16.msra.mxu0 %v272
    %339 = vmatpush.bf16.msra.mxu0 %v268
    %340 = vmatmul.bf16.gmra.mxu0 %v170
    %v341 = vpop.f32.mrf.mxu0
    %v342 = vadd.f32 0.0, %v341
    %v343 = vpop.f32.mrf.mxu0
    %v344 = vadd.f32 0.0, %v343
    %345 = vdwg.mxu0
    %346 = vmatpush.bf16.msra.mxu0 %v297
    %347 = vmatpush.bf16.msra.mxu0 %v293
    %348 = vmatpush.bf16.msra.mxu0 %v289
    %349 = vmatpush.bf16.msra.mxu0 %v285
    %350 = vmatpush.bf16.msra.mxu0 %v281
    %351 = vmatpush.bf16.msra.mxu0 %v277
    %352 = vmatpush.bf16.msra.mxu0 %v273
    %353 = vmatpush.bf16.msra.mxu0 %v269
    %354 = vmatmul.bf16.gmra.mxu0 %v170
    %v355 = vpop.f32.mrf.mxu0
    %v356 = vadd.f32 0.0, %v355
    %v357 = vpop.f32.mrf.mxu0
    %v358 = vadd.f32 0.0, %v357
    %359 = vdwg.mxu0
    %360 = vmatpush.bf16.msra.mxu0 %v298
    %361 = vmatpush.bf16.msra.mxu0 %v294
    %362 = vmatpush.bf16.msra.mxu0 %v290
    %363 = vmatpush.bf16.msra.mxu0 %v286
    %364 = vmatpush.bf16.msra.mxu0 %v282
    %365 = vmatpush.bf16.msra.mxu0 %v278
    %366 = vmatpush.bf16.msra.mxu0 %v274
    %367 = vmatpush.bf16.msra.mxu0 %v270
    %368 = vmatmul.bf16.gmra.mxu0 %v170
    %v369 = vpop.f32.mrf.mxu0
    %v370 = vadd.f32 0.0, %v369
    %v371 = vpop.f32.mrf.mxu0
    %v372 = vadd.f32 0.0, %v371
    %373 = vdwg.mxu0
    %374 = vmatpush.bf16.msra.mxu0 %v299
    %375 = vmatpush.bf16.msra.mxu0 %v295
    %376 = vmatpush.bf16.msra.mxu0 %v291
    %377 = vmatpush.bf16.msra.mxu0 %v287
    %378 = vmatpush.bf16.msra.mxu0 %v283
    %379 = vmatpush.bf16.msra.mxu0 %v279
    %380 = vmatpush.bf16.msra.mxu0 %v275
    %381 = vmatpush.bf16.msra.mxu0 %v271
    %382 = vmatmul.bf16.gmra.mxu0 %v170
    %v383 = vpop.f32.mrf.mxu0
    %v384 = vadd.f32 0.0, %v383
    %v385 = vpop.f32.mrf.mxu0
    %v386 = vadd.f32 0.0, %v385
    %387 = vdwg.mxu0
    %v388 = vld [vmem:[#allocation7] sm:$0xf]
    %v389 = vld [vmem:[#allocation8] sm:$0xf]
    %v390 = vadd.f32 %v342, %v344
    %v391 = vrot.slane %v390, 4
    %v392 = vadd.f32 %v390, %v391
    %v393 = vrot.slane %v392, 2
    %v394 = vadd.f32 %v392, %v393
    %v395 = vrot.slane %v394, 1
    %v396 = vadd.f32 %v394, %v395
    %v397 = vadd.f32 %v356, %v358
    %v398 = vrot.slane %v397, 4
    %v399 = vadd.f32 %v397, %v398
    %v400 = vrot.slane %v399, 2
    %v401 = vadd.f32 %v399, %v400
    %v402 = vrot.slane %v401, 1
    %v403 = vadd.f32 %v401, %v402
    %v404 = vadd.f32 %v370, %v372
    %v405 = vrot.slane %v404, 4
    %v406 = vadd.f32 %v404, %v405
    %v407 = vrot.slane %v406, 2
    %v408 = vadd.f32 %v406, %v407
    %v409 = vrot.slane %v408, 1
    %v410 = vadd.f32 %v408, %v409
    %v411 = vadd.f32 %v384, %v386
    %v412 = vrot.slane %v411, 4
    %v413 = vadd.f32 %v411, %v412
    %v414 = vrot.slane %v413, 2
    %v415 = vadd.f32 %v413, %v414
    %v416 = vrot.slane %v415, 1
    %v417 = vadd.f32 %v415, %v416
    %v418 = vmul.f32 %v396, 0.125
    %v419 = vmul.f32 %v403, 0.125
    %v420 = vmul.f32 %v410, 0.125
    %v421 = vmul.f32 %v417, 0.125
    %v422 = vmul.f32 %v342, %v342
    %v423 = vmul.f32 %v356, %v356
    %v424 = vmul.f32 %v370, %v370
    %v425 = vmul.f32 %v384, %v384
    %v426 = vmul.f32 %v344, %v344
    %v427 = vmul.f32 %v358, %v358
    %v428 = vmul.f32 %v372, %v372
    %v429 = vmul.f32 %v386, %v386
    %v430 = vadd.f32 %v422, %v426
    %v431 = vrot.slane %v430, 4
    %v432 = vadd.f32 %v430, %v431
    %v433 = vrot.slane %v432, 2
    %v434 = vadd.f32 %v432, %v433
    %v435 = vrot.slane %v434, 1
    %v436 = vadd.f32 %v434, %v435
    %v437 = vadd.f32 %v423, %v427
    %v438 = vrot.slane %v437, 4
    %v439 = vadd.f32 %v437, %v438
    %v440 = vrot.slane %v439, 2
    %v441 = vadd.f32 %v439, %v440
    %v442 = vrot.slane %v441, 1
    %v443 = vadd.f32 %v441, %v442
    %v444 = vadd.f32 %v424, %v428
    %v445 = vrot.slane %v444, 4
    %v446 = vadd.f32 %v444, %v445
    %v447 = vrot.slane %v446, 2
    %v448 = vadd.f32 %v446, %v447
    %v449 = vrot.slane %v448, 1
    %v450 = vadd.f32 %v448, %v449
    %v451 = vadd.f32 %v425, %v429
    %v452 = vrot.slane %v451, 4
    %v453 = vadd.f32 %v451, %v452
    %v454 = vrot.slane %v453, 2
    %v455 = vadd.f32 %v453, %v454
    %v456 = vrot.slane %v455, 1
    %v457 = vadd.f32 %v455, %v456
    %v458 = vmul.f32 %v436, 0.125
    %v459 = vmul.f32 %v443, 0.125
    %v460 = vmul.f32 %v450, 0.125
    %v461 = vmul.f32 %v457, 0.125
    %v462 = vmul.f32 %v418, %v418
    %v463 = vmul.f32 %v419, %v419
    %v464 = vmul.f32 %v420, %v420
    %v465 = vmul.f32 %v421, %v421
    %v466 = vsub.f32 %v458, %v462
    %v467 = vsub.f32 %v459, %v463
    %v468 = vsub.f32 %v460, %v464
    %v469 = vsub.f32 %v461, %v465
    %v470 = vmax.f32 %v466, 0.0
    %v471 = vmax.f32 %v467, 0.0
    %v472 = vmax.f32 %v468, 0.0
    %v473 = vmax.f32 %v469, 0.0
    %v474 = vadd.f32 %v470, 1e-05
    %v475 = vadd.f32 %v471, 1e-05
    %v476 = vadd.f32 %v472, 1e-05
    %v477 = vadd.f32 %v473, 1e-05
    %v478 = vrsqrt.pop %v474
    %v479 = vmul.f32 %v478, %v474
    %v480 = vmul.f32 %v479, %v478
    %v481 = vmul.f32 0.5, %v480
    %v482 = vsub.f32 1.5, %v481
    %v483 = vmul.f32 %v478, %v482
    %vm484 = vweird.f32 %v474
    %vm485 = vweird.f32 %v478
    %vm486 = vmor %vm484, %vm485
    %v487 = vsel %vm486, %v478, %v483
    %v488 = vrsqrt.pop %v475
    %v489 = vmul.f32 %v488, %v475
    %v490 = vmul.f32 %v489, %v488
    %v491 = vmul.f32 0.5, %v490
    %v492 = vsub.f32 1.5, %v491
    %v493 = vmul.f32 %v488, %v492
    %vm494 = vweird.f32 %v475
    %vm495 = vweird.f32 %v488
    %vm496 = vmor %vm494, %vm495
    %v497 = vsel %vm496, %v488, %v493
    %v498 = vrsqrt.pop %v476
    %v499 = vmul.f32 %v498, %v476
    %v500 = vmul.f32 %v499, %v498
    %v501 = vmul.f32 0.5, %v500
    %v502 = vsub.f32 1.5, %v501
    %v503 = vmul.f32 %v498, %v502
    %vm504 = vweird.f32 %v476
    %vm505 = vweird.f32 %v498
    %vm506 = vmor %vm504, %vm505
    %v507 = vsel %vm506, %v498, %v503
    %v508 = vrsqrt.pop %v477
    %v509 = vmul.f32 %v508, %v477
    %v510 = vmul.f32 %v509, %v508
    %v511 = vmul.f32 0.5, %v510
    %v512 = vsub.f32 1.5, %v511
    %v513 = vmul.f32 %v508, %v512
    %vm514 = vweird.f32 %v477
    %vm515 = vweird.f32 %v508
    %vm516 = vmor %vm514, %vm515
    %v517 = vsel %vm516, %v508, %v513
    %v522 = vrot.slane %v497, 7
    %v523 = vrot.slane %v507, 6
    %v524 = vrot.slane %v517, 5
    %vm525 = vcmask 1040384
    %v526 = vsel %vm525, %v487, %v522
    %vm527 = vcmask 1042434
    %v528 = vsel %vm527, %v523, %v524
    %vm529 = vcmask 1041408
    %v530 = vsel %vm529, %v526, %v528
    %v532 = vmul.f32 %v388, %v530
    %v534 = vperm.slane %v532, 0
    %v535 = vperm.slane %v532, 1
    %v536 = vperm.slane %v532, 2
    %v537 = vperm.slane %v532, 3
    %v542 = vmul.f32 %v418, %v534
    %v543 = vmul.f32 %v419, %v535
    %v544 = vmul.f32 %v420, %v536
    %v545 = vmul.f32 %v421, %v537
    %v550 = vrot.slane %v543, 7
    %v551 = vrot.slane %v544, 6
    %v552 = vrot.slane %v545, 5
    %v553 = vsel %vm525, %v542, %v550
    %v554 = vsel %vm527, %v551, %v552
    %v555 = vsel %vm529, %v553, %v554
    %v557 = vsub.f32 %v389, %v555
    %v558 = vmul.f32 %v342, %v534
    %v559 = vmul.f32 %v356, %v535
    %v560 = vmul.f32 %v370, %v536
    %v561 = vmul.f32 %v384, %v537
    %v562 = vmul.f32 %v344, %v534
    %v563 = vmul.f32 %v358, %v535
    %v564 = vmul.f32 %v372, %v536
    %v565 = vmul.f32 %v386, %v537
    %v567 = vperm.slane %v557, 0
    %v568 = vperm.slane %v557, 1
    %v569 = vperm.slane %v557, 2
    %v570 = vperm.slane %v557, 3
    %v575 = vadd.f32 %v558, %v567
    %v576 = vadd.f32 %v559, %v568
    %v577 = vadd.f32 %v560, %v569
    %v578 = vadd.f32 %v561, %v570
    %v579 = vadd.f32 %v562, %v567
    %v580 = vadd.f32 %v563, %v568
    %v581 = vadd.f32 %v564, %v569
    %v582 = vadd.f32 %v565, %v570
    %v583 = vmax.f32 %v575, 0.0
    %v584 = vmax.f32 %v576, 0.0
    %v585 = vmax.f32 %v577, 0.0
    %v586 = vmax.f32 %v578, 0.0
    %v587 = vmax.f32 %v579, 0.0
    %v588 = vmax.f32 %v580, 0.0
    %v589 = vmax.f32 %v581, 0.0
    %v590 = vmax.f32 %v582, 0.0
    %v591 = vmul.f32 %v583, %v130
    %v592 = vmul.f32 %v584, %v130
    %v593 = vmul.f32 %v585, %v130
    %v594 = vmul.f32 %v586, %v130
    %v595 = vmul.f32 %v587, %v131
    %v596 = vmul.f32 %v588, %v131
    %v597 = vmul.f32 %v589, %v131
    %v598 = vmul.f32 %v590, %v131
    %v599 = vpack.c.bf16 %v595, %v591
    %v600 = vpack.c.bf16 %v596, %v592
    %v601 = vpack.c.bf16 %v597, %v593
    %v602 = vpack.c.bf16 %v598, %v594
    %v603 = vld [vmem:[#allocation10] sm:$0xff]
    %v604 = vld [vmem:[#allocation10 + $0x8] sm:$0xff]
    %v605 = vld [vmem:[#allocation10 + $0x10] sm:$0xff]
    %v606 = vld [vmem:[#allocation10 + $0x18] sm:$0xff]
    %v607 = vld [vmem:[#allocation10 + $0x20] sm:$0xff]
    %v608 = vld [vmem:[#allocation10 + $0x28] sm:$0xff]
    %v609 = vld [vmem:[#allocation10 + $0x30] sm:$0xff]
    %v610 = vld [vmem:[#allocation10 + $0x38] sm:$0xff]
    %v611 = vld [vmem:[#allocation10 + $0x40] sm:$0xff]
    %v612 = vld [vmem:[#allocation10 + $0x48] sm:$0xff]
    %v613 = vld [vmem:[#allocation10 + $0x50] sm:$0xff]
    %v614 = vld [vmem:[#allocation10 + $0x58] sm:$0xff]
    %v615 = vld [vmem:[#allocation10 + $0x60] sm:$0xff]
    %v616 = vld [vmem:[#allocation10 + $0x68] sm:$0xff]
    %v617 = vld [vmem:[#allocation10 + $0x70] sm:$0xff]
    %v618 = vld [vmem:[#allocation10 + $0x78] sm:$0xff]
    %v619 = vld [vmem:[#allocation10 + $0x80] sm:$0xff]
    %v620 = vld [vmem:[#allocation10 + $0x88] sm:$0xff]
    %v621 = vld [vmem:[#allocation10 + $0x90] sm:$0xff]
    %v622 = vld [vmem:[#allocation10 + $0x98] sm:$0xff]
    %v623 = vld [vmem:[#allocation10 + $0xa0] sm:$0xff]
    %v624 = vld [vmem:[#allocation10 + $0xa8] sm:$0xff]
    %v625 = vld [vmem:[#allocation10 + $0xb0] sm:$0xff]
    %v626 = vld [vmem:[#allocation10 + $0xb8] sm:$0xff]
    %v627 = vld [vmem:[#allocation10 + $0xc0] sm:$0xff]
    %v628 = vld [vmem:[#allocation10 + $0xc8] sm:$0xff]
    %v629 = vld [vmem:[#allocation10 + $0xd0] sm:$0xff]
    %v630 = vld [vmem:[#allocation10 + $0xd8] sm:$0xff]
    %v631 = vld [vmem:[#allocation10 + $0xe0] sm:$0xff]
    %v632 = vld [vmem:[#allocation10 + $0xe8] sm:$0xff]
    %v633 = vld [vmem:[#allocation10 + $0xf0] sm:$0xff]
    %v634 = vld [vmem:[#allocation10 + $0xf8] sm:$0xff]
    %v635 = vld [vmem:[#allocation10 + $0x100] sm:$0xff]
    %v636 = vld [vmem:[#allocation10 + $0x108] sm:$0xff]
    %v637 = vld [vmem:[#allocation10 + $0x110] sm:$0xff]
    %v638 = vld [vmem:[#allocation10 + $0x118] sm:$0xff]
    %v639 = vld [vmem:[#allocation10 + $0x120] sm:$0xff]
    %v640 = vld [vmem:[#allocation10 + $0x128] sm:$0xff]
    %v641 = vld [vmem:[#allocation10 + $0x130] sm:$0xff]
    %v642 = vld [vmem:[#allocation10 + $0x138] sm:$0xff]
    %v643 = vld [vmem:[#allocation10 + $0x140] sm:$0xff]
    %v644 = vld [vmem:[#allocation10 + $0x148] sm:$0xff]
    %v645 = vld [vmem:[#allocation10 + $0x150] sm:$0xff]
    %v646 = vld [vmem:[#allocation10 + $0x158] sm:$0xff]
    %v647 = vld [vmem:[#allocation10 + $0x160] sm:$0xff]
    %v648 = vld [vmem:[#allocation10 + $0x168] sm:$0xff]
    %v649 = vld [vmem:[#allocation10 + $0x170] sm:$0xff]
    %v650 = vld [vmem:[#allocation10 + $0x178] sm:$0xff]
    %v651 = vld [vmem:[#allocation10 + $0x180] sm:$0xff]
    %v652 = vld [vmem:[#allocation10 + $0x188] sm:$0xff]
    %v653 = vld [vmem:[#allocation10 + $0x190] sm:$0xff]
    %v654 = vld [vmem:[#allocation10 + $0x198] sm:$0xff]
    %v655 = vld [vmem:[#allocation10 + $0x1a0] sm:$0xff]
    %v656 = vld [vmem:[#allocation10 + $0x1a8] sm:$0xff]
    %v657 = vld [vmem:[#allocation10 + $0x1b0] sm:$0xff]
    %v658 = vld [vmem:[#allocation10 + $0x1b8] sm:$0xff]
    %v659 = vld [vmem:[#allocation10 + $0x1c0] sm:$0xff]
    %v660 = vld [vmem:[#allocation10 + $0x1c8] sm:$0xff]
    %v661 = vld [vmem:[#allocation10 + $0x1d0] sm:$0xff]
    %v662 = vld [vmem:[#allocation10 + $0x1d8] sm:$0xff]
    %v663 = vld [vmem:[#allocation10 + $0x1e0] sm:$0xff]
    %v664 = vld [vmem:[#allocation10 + $0x1e8] sm:$0xff]
    %v665 = vld [vmem:[#allocation10 + $0x1f0] sm:$0xff]
    %v666 = vld [vmem:[#allocation10 + $0x1f8] sm:$0xff]
    %v731 = vunpack.c.l.b16 %v603
    %v732 = vunpack.c.h.b16 %v603
    %v733 = vunpack.c.l.b16 %v604
    %v734 = vunpack.c.h.b16 %v604
    %v735 = vunpack.c.l.b16 %v605
    %v736 = vunpack.c.h.b16 %v605
    %v737 = vunpack.c.l.b16 %v606
    %v738 = vunpack.c.h.b16 %v606
    %v739 = vunpack.c.l.b16 %v607
    %v740 = vunpack.c.h.b16 %v607
    %v741 = vunpack.c.l.b16 %v608
    %v742 = vunpack.c.h.b16 %v608
    %v743 = vunpack.c.l.b16 %v609
    %v744 = vunpack.c.h.b16 %v609
    %v745 = vunpack.c.l.b16 %v610
    %v746 = vunpack.c.h.b16 %v610
    %v747 = vunpack.c.l.b16 %v611
    %v748 = vunpack.c.h.b16 %v611
    %v749 = vunpack.c.l.b16 %v612
    %v750 = vunpack.c.h.b16 %v612
    %v751 = vunpack.c.l.b16 %v613
    %v752 = vunpack.c.h.b16 %v613
    %v753 = vunpack.c.l.b16 %v614
    %v754 = vunpack.c.h.b16 %v614
    %v755 = vunpack.c.l.b16 %v615
    %v756 = vunpack.c.h.b16 %v615
    %v757 = vunpack.c.l.b16 %v616
    %v758 = vunpack.c.h.b16 %v616
    %v759 = vunpack.c.l.b16 %v617
    %v760 = vunpack.c.h.b16 %v617
    %v761 = vunpack.c.l.b16 %v618
    %v762 = vunpack.c.h.b16 %v618
    %v763 = vunpack.c.l.b16 %v619
    %v764 = vunpack.c.h.b16 %v619
    %v765 = vunpack.c.l.b16 %v620
    %v766 = vunpack.c.h.b16 %v620
    %v767 = vunpack.c.l.b16 %v621
    %v768 = vunpack.c.h.b16 %v621
    %v769 = vunpack.c.l.b16 %v622
    %v770 = vunpack.c.h.b16 %v622
    %v771 = vunpack.c.l.b16 %v623
    %v772 = vunpack.c.h.b16 %v623
    %v773 = vunpack.c.l.b16 %v624
    %v774 = vunpack.c.h.b16 %v624
    %v775 = vunpack.c.l.b16 %v625
    %v776 = vunpack.c.h.b16 %v625
    %v777 = vunpack.c.l.b16 %v626
    %v778 = vunpack.c.h.b16 %v626
    %v779 = vunpack.c.l.b16 %v627
    %v780 = vunpack.c.h.b16 %v627
    %v781 = vunpack.c.l.b16 %v628
    %v782 = vunpack.c.h.b16 %v628
    %v783 = vunpack.c.l.b16 %v629
    %v784 = vunpack.c.h.b16 %v629
    %v785 = vunpack.c.l.b16 %v630
    %v786 = vunpack.c.h.b16 %v630
    %v787 = vunpack.c.l.b16 %v631
    %v788 = vunpack.c.h.b16 %v631
    %v789 = vunpack.c.l.b16 %v632
    %v790 = vunpack.c.h.b16 %v632
    %v791 = vunpack.c.l.b16 %v633
    %v792 = vunpack.c.h.b16 %v633
    %v793 = vunpack.c.l.b16 %v634
    %v794 = vunpack.c.h.b16 %v634
    %v795 = vunpack.c.l.b16 %v635
    %v796 = vunpack.c.h.b16 %v635
    %v797 = vunpack.c.l.b16 %v636
    %v798 = vunpack.c.h.b16 %v636
    %v799 = vunpack.c.l.b16 %v637
    %v800 = vunpack.c.h.b16 %v637
    %v801 = vunpack.c.l.b16 %v638
    %v802 = vunpack.c.h.b16 %v638
    %v803 = vunpack.c.l.b16 %v639
    %v804 = vunpack.c.h.b16 %v639
    %v805 = vunpack.c.l.b16 %v640
    %v806 = vunpack.c.h.b16 %v640
    %v807 = vunpack.c.l.b16 %v641
    %v808 = vunpack.c.h.b16 %v641
    %v809 = vunpack.c.l.b16 %v642
    %v810 = vunpack.c.h.b16 %v642
    %v811 = vunpack.c.l.b16 %v643
    %v812 = vunpack.c.h.b16 %v643
    %v813 = vunpack.c.l.b16 %v644
    %v814 = vunpack.c.h.b16 %v644
    %v815 = vunpack.c.l.b16 %v645
    %v816 = vunpack.c.h.b16 %v645
    %v817 = vunpack.c.l.b16 %v646
    %v818 = vunpack.c.h.b16 %v646
    %v819 = vunpack.c.l.b16 %v647
    %v820 = vunpack.c.h.b16 %v647
    %v821 = vunpack.c.l.b16 %v648
    %v822 = vunpack.c.h.b16 %v648
    %v823 = vunpack.c.l.b16 %v649
    %v824 = vunpack.c.h.b16 %v649
    %v825 = vunpack.c.l.b16 %v650
    %v826 = vunpack.c.h.b16 %v650
    %v827 = vunpack.c.l.b16 %v651
    %v828 = vunpack.c.h.b16 %v651
    %v829 = vunpack.c.l.b16 %v652
    %v830 = vunpack.c.h.b16 %v652
    %v831 = vunpack.c.l.b16 %v653
    %v832 = vunpack.c.h.b16 %v653
    %v833 = vunpack.c.l.b16 %v654
    %v834 = vunpack.c.h.b16 %v654
    %v835 = vunpack.c.l.b16 %v655
    %v836 = vunpack.c.h.b16 %v655
    %v837 = vunpack.c.l.b16 %v656
    %v838 = vunpack.c.h.b16 %v656
    %v839 = vunpack.c.l.b16 %v657
    %v840 = vunpack.c.h.b16 %v657
    %v841 = vunpack.c.l.b16 %v658
    %v842 = vunpack.c.h.b16 %v658
    %v843 = vunpack.c.l.b16 %v659
    %v844 = vunpack.c.h.b16 %v659
    %v845 = vunpack.c.l.b16 %v660
    %v846 = vunpack.c.h.b16 %v660
    %v847 = vunpack.c.l.b16 %v661
    %v848 = vunpack.c.h.b16 %v661
    %v849 = vunpack.c.l.b16 %v662
    %v850 = vunpack.c.h.b16 %v662
    %v851 = vunpack.c.l.b16 %v663
    %v852 = vunpack.c.h.b16 %v663
    %v853 = vunpack.c.l.b16 %v664
    %v854 = vunpack.c.h.b16 %v664
    %v855 = vunpack.c.l.b16 %v665
    %v856 = vunpack.c.h.b16 %v665
    %v857 = vunpack.c.l.b16 %v666
    %v858 = vunpack.c.h.b16 %v666
    %v859 = vpack.c.b16 %v733, %v731
    %v860 = vpack.c.b16 %v734, %v732
    %v861 = vpack.c.b16 %v737, %v735
    %v862 = vpack.c.b16 %v738, %v736
    %v863 = vpack.c.b16 %v741, %v739
    %v864 = vpack.c.b16 %v742, %v740
    %v865 = vpack.c.b16 %v745, %v743
    %v866 = vpack.c.b16 %v746, %v744
    %v867 = vpack.c.b16 %v749, %v747
    %v868 = vpack.c.b16 %v750, %v748
    %v869 = vpack.c.b16 %v753, %v751
    %v870 = vpack.c.b16 %v754, %v752
    %v871 = vpack.c.b16 %v757, %v755
    %v872 = vpack.c.b16 %v758, %v756
    %v873 = vpack.c.b16 %v761, %v759
    %v874 = vpack.c.b16 %v762, %v760
    %v875 = vpack.c.b16 %v765, %v763
    %v876 = vpack.c.b16 %v766, %v764
    %v877 = vpack.c.b16 %v769, %v767
    %v878 = vpack.c.b16 %v770, %v768
    %v879 = vpack.c.b16 %v773, %v771
    %v880 = vpack.c.b16 %v774, %v772
    %v881 = vpack.c.b16 %v777, %v775
    %v882 = vpack.c.b16 %v778, %v776
    %v883 = vpack.c.b16 %v781, %v779
    %v884 = vpack.c.b16 %v782, %v780
    %v885 = vpack.c.b16 %v785, %v783
    %v886 = vpack.c.b16 %v786, %v784
    %v887 = vpack.c.b16 %v789, %v787
    %v888 = vpack.c.b16 %v790, %v788
    %v889 = vpack.c.b16 %v793, %v791
    %v890 = vpack.c.b16 %v794, %v792
    %v891 = vpack.c.b16 %v797, %v795
    %v892 = vpack.c.b16 %v798, %v796
    %v893 = vpack.c.b16 %v801, %v799
    %v894 = vpack.c.b16 %v802, %v800
    %v895 = vpack.c.b16 %v805, %v803
    %v896 = vpack.c.b16 %v806, %v804
    %v897 = vpack.c.b16 %v809, %v807
    %v898 = vpack.c.b16 %v810, %v808
    %v899 = vpack.c.b16 %v813, %v811
    %v900 = vpack.c.b16 %v814, %v812
    %v901 = vpack.c.b16 %v817, %v815
    %v902 = vpack.c.b16 %v818, %v816
    %v903 = vpack.c.b16 %v821, %v819
    %v904 = vpack.c.b16 %v822, %v820
    %v905 = vpack.c.b16 %v825, %v823
    %v906 = vpack.c.b16 %v826, %v824
    %v907 = vpack.c.b16 %v829, %v827
    %v908 = vpack.c.b16 %v830, %v828
    %v909 = vpack.c.b16 %v833, %v831
    %v910 = vpack.c.b16 %v834, %v832
    %v911 = vpack.c.b16 %v837, %v835
    %v912 = vpack.c.b16 %v838, %v836
    %v913 = vpack.c.b16 %v841, %v839
    %v914 = vpack.c.b16 %v842, %v840
    %v915 = vpack.c.b16 %v845, %v843
    %v916 = vpack.c.b16 %v846, %v844
    %v917 = vpack.c.b16 %v849, %v847
    %v918 = vpack.c.b16 %v850, %v848
    %v919 = vpack.c.b16 %v853, %v851
    %v920 = vpack.c.b16 %v854, %v852
    %v921 = vpack.c.b16 %v857, %v855
    %v922 = vpack.c.b16 %v858, %v856
    %987 = vmatpush.bf16.msra.mxu0 %v873
    %988 = vmatpush.bf16.msra.mxu0 %v871
    %989 = vmatpush.bf16.msra.mxu0 %v869
    %990 = vmatpush.bf16.msra.mxu0 %v867
    %991 = vmatpush.bf16.msra.mxu0 %v865
    %992 = vmatpush.bf16.msra.mxu0 %v863
    %993 = vmatpush.bf16.msra.mxu0 %v861
    %994 = vmatpush.bf16.msra.mxu0 %v859
    %995 = vmatmul.bf16.gmra.mxu0 %v599
    %v996 = vpop.f32.mrf.mxu0
    %v997 = vadd.f32 0.0, %v996
    %v998 = vpop.f32.mrf.mxu0
    %v999 = vadd.f32 0.0, %v998
    %1000 = vdwg.mxu0
    %1001 = vmatpush.bf16.msra.mxu0 %v889
    %1002 = vmatpush.bf16.msra.mxu0 %v887
    %1003 = vmatpush.bf16.msra.mxu0 %v885
    %1004 = vmatpush.bf16.msra.mxu0 %v883
    %1005 = vmatpush.bf16.msra.mxu0 %v881
    %1006 = vmatpush.bf16.msra.mxu0 %v879
    %1007 = vmatpush.bf16.msra.mxu0 %v877
    %1008 = vmatpush.bf16.msra.mxu0 %v875
    %1009 = vmatmul.bf16.gmra.mxu0 %v600
    %v1010 = vpop.f32.mrf.mxu0
    %v1011 = vadd.f32 %v997, %v1010
    %v1012 = vpop.f32.mrf.mxu0
    %v1013 = vadd.f32 %v999, %v1012
    %1014 = vdwg.mxu0
    %1015 = vmatpush.bf16.msra.mxu0 %v905
    %1016 = vmatpush.bf16.msra.mxu0 %v903
    %1017 = vmatpush.bf16.msra.mxu0 %v901
    %1018 = vmatpush.bf16.msra.mxu0 %v899
    %1019 = vmatpush.bf16.msra.mxu0 %v897
    %1020 = vmatpush.bf16.msra.mxu0 %v895
    %1021 = vmatpush.bf16.msra.mxu0 %v893
    %1022 = vmatpush.bf16.msra.mxu0 %v891
    %1023 = vmatmul.bf16.gmra.mxu0 %v601
    %v1024 = vpop.f32.mrf.mxu0
    %v1025 = vadd.f32 %v1011, %v1024
    %v1026 = vpop.f32.mrf.mxu0
    %v1027 = vadd.f32 %v1013, %v1026
    %1028 = vdwg.mxu0
    %1029 = vmatpush.bf16.msra.mxu0 %v921
    %1030 = vmatpush.bf16.msra.mxu0 %v919
    %1031 = vmatpush.bf16.msra.mxu0 %v917
    %1032 = vmatpush.bf16.msra.mxu0 %v915
    %1033 = vmatpush.bf16.msra.mxu0 %v913
    %1034 = vmatpush.bf16.msra.mxu0 %v911
    %1035 = vmatpush.bf16.msra.mxu0 %v909
    %1036 = vmatpush.bf16.msra.mxu0 %v907
    %1037 = vmatmul.bf16.gmra.mxu0 %v602
    %v1038 = vpop.f32.mrf.mxu0
    %v1039 = vadd.f32 %v1025, %v1038
    %v1040 = vpop.f32.mrf.mxu0
    %v1041 = vadd.f32 %v1027, %v1040
    %1042 = vdwg.mxu0
    %1043 = vmatpush.bf16.msra.mxu0 %v874
    %1044 = vmatpush.bf16.msra.mxu0 %v872
    %1045 = vmatpush.bf16.msra.mxu0 %v870
    %1046 = vmatpush.bf16.msra.mxu0 %v868
    %1047 = vmatpush.bf16.msra.mxu0 %v866
    %1048 = vmatpush.bf16.msra.mxu0 %v864
    %1049 = vmatpush.bf16.msra.mxu0 %v862
    %1050 = vmatpush.bf16.msra.mxu0 %v860
    %1051 = vmatmul.bf16.gmra.mxu0 %v599
    %v1052 = vpop.f32.mrf.mxu0
    %v1053 = vadd.f32 0.0, %v1052
    %v1054 = vpop.f32.mrf.mxu0
    %v1055 = vadd.f32 0.0, %v1054
    %1056 = vdwg.mxu0
    %1057 = vmatpush.bf16.msra.mxu0 %v890
    %1058 = vmatpush.bf16.msra.mxu0 %v888
    %1059 = vmatpush.bf16.msra.mxu0 %v886
    %1060 = vmatpush.bf16.msra.mxu0 %v884
    %1061 = vmatpush.bf16.msra.mxu0 %v882
    %1062 = vmatpush.bf16.msra.mxu0 %v880
    %1063 = vmatpush.bf16.msra.mxu0 %v878
    %1064 = vmatpush.bf16.msra.mxu0 %v876
    %1065 = vmatmul.bf16.gmra.mxu0 %v600
    %v1066 = vpop.f32.mrf.mxu0
    %v1067 = vadd.f32 %v1053, %v1066
    %v1068 = vpop.f32.mrf.mxu0
    %v1069 = vadd.f32 %v1055, %v1068
    %1070 = vdwg.mxu0
    %1071 = vmatpush.bf16.msra.mxu0 %v906
    %1072 = vmatpush.bf16.msra.mxu0 %v904
    %1073 = vmatpush.bf16.msra.mxu0 %v902
    %1074 = vmatpush.bf16.msra.mxu0 %v900
    %1075 = vmatpush.bf16.msra.mxu0 %v898
    %1076 = vmatpush.bf16.msra.mxu0 %v896
    %1077 = vmatpush.bf16.msra.mxu0 %v894
    %1078 = vmatpush.bf16.msra.mxu0 %v892
    %1079 = vmatmul.bf16.gmra.mxu0 %v601
    %v1080 = vpop.f32.mrf.mxu0
    %v1081 = vadd.f32 %v1067, %v1080
    %v1082 = vpop.f32.mrf.mxu0
    %v1083 = vadd.f32 %v1069, %v1082
    %1084 = vdwg.mxu0
    %1085 = vmatpush.bf16.msra.mxu0 %v922
    %1086 = vmatpush.bf16.msra.mxu0 %v920
    %1087 = vmatpush.bf16.msra.mxu0 %v918
    %1088 = vmatpush.bf16.msra.mxu0 %v916
    %1089 = vmatpush.bf16.msra.mxu0 %v914
    %1090 = vmatpush.bf16.msra.mxu0 %v912
    %1091 = vmatpush.bf16.msra.mxu0 %v910
    %1092 = vmatpush.bf16.msra.mxu0 %v908
    %1093 = vmatmul.bf16.gmra.mxu0 %v602
    %v1094 = vpop.f32.mrf.mxu0
    %v1095 = vadd.f32 %v1081, %v1094
    %v1096 = vpop.f32.mrf.mxu0
    %v1097 = vadd.f32 %v1083, %v1096
    %1098 = vdwg.mxu0
    %v1099 = vld [vmem:[%s5] sm:$0x3]
    %v1100 = vld [vmem:[%s6] sm:$0x3]
    %v1101 = vadd.f32 %v1039, %v1041
    %v1102 = vrot.slane %v1101, 4
    %v1103 = vadd.f32 %v1101, %v1102
    %v1104 = vrot.slane %v1103, 2
    %v1105 = vadd.f32 %v1103, %v1104
    %v1106 = vrot.slane %v1105, 1
    %v1107 = vadd.f32 %v1105, %v1106
    %v1108 = vadd.f32 %v1095, %v1097
    %v1109 = vrot.slane %v1108, 4
    %v1110 = vadd.f32 %v1108, %v1109
    %v1111 = vrot.slane %v1110, 2
    %v1112 = vadd.f32 %v1110, %v1111
    %v1113 = vrot.slane %v1112, 1
    %v1114 = vadd.f32 %v1112, %v1113
    %v1115 = vmul.f32 %v1107, 0.125
    %v1116 = vmul.f32 %v1114, 0.125
    %v1117 = vmul.f32 %v1039, %v1039
    %v1118 = vmul.f32 %v1095, %v1095
    %v1119 = vmul.f32 %v1041, %v1041
    %v1120 = vmul.f32 %v1097, %v1097
    %v1121 = vadd.f32 %v1117, %v1119
    %v1122 = vrot.slane %v1121, 4
    %v1123 = vadd.f32 %v1121, %v1122
    %v1124 = vrot.slane %v1123, 2
    %v1125 = vadd.f32 %v1123, %v1124
    %v1126 = vrot.slane %v1125, 1
    %v1127 = vadd.f32 %v1125, %v1126
    %v1128 = vadd.f32 %v1118, %v1120
    %v1129 = vrot.slane %v1128, 4
    %v1130 = vadd.f32 %v1128, %v1129
    %v1131 = vrot.slane %v1130, 2
    %v1132 = vadd.f32 %v1130, %v1131
    %v1133 = vrot.slane %v1132, 1
    %v1134 = vadd.f32 %v1132, %v1133
    %v1135 = vmul.f32 %v1127, 0.125
    %v1136 = vmul.f32 %v1134, 0.125
    %v1137 = vmul.f32 %v1115, %v1115
    %v1138 = vmul.f32 %v1116, %v1116
    %v1139 = vsub.f32 %v1135, %v1137
    %v1140 = vsub.f32 %v1136, %v1138
    %v1141 = vmax.f32 %v1139, 0.0
    %v1142 = vmax.f32 %v1140, 0.0
    %v1143 = vadd.f32 %v1141, 1e-05
    %v1144 = vadd.f32 %v1142, 1e-05
    %v1145 = vrsqrt.pop %v1143
    %v1146 = vmul.f32 %v1145, %v1143
    %v1147 = vmul.f32 %v1146, %v1145
    %v1148 = vmul.f32 0.5, %v1147
    %v1149 = vsub.f32 1.5, %v1148
    %v1150 = vmul.f32 %v1145, %v1149
    %vm1151 = vweird.f32 %v1143
    %vm1152 = vweird.f32 %v1145
    %vm1153 = vmor %vm1151, %vm1152
    %v1154 = vsel %vm1153, %v1145, %v1150
    %v1155 = vrsqrt.pop %v1144
    %v1156 = vmul.f32 %v1155, %v1144
    %v1157 = vmul.f32 %v1156, %v1155
    %v1158 = vmul.f32 0.5, %v1157
    %v1159 = vsub.f32 1.5, %v1158
    %v1160 = vmul.f32 %v1155, %v1159
    %vm1161 = vweird.f32 %v1144
    %vm1162 = vweird.f32 %v1155
    %vm1163 = vmor %vm1161, %vm1162
    %v1164 = vsel %vm1163, %v1155, %v1160
    %v1167 = vrot.slane %v1164, 7
    %v1168 = vsel %vm525, %v1154, %v1167
    %v1170 = vmul.f32 %v1099, %v1168
    %v1172 = vperm.slane %v1170, 0
    %v1173 = vperm.slane %v1170, 1
    %v1176 = vmul.f32 %v1115, %v1172
    %v1177 = vmul.f32 %v1116, %v1173
    %v1180 = vrot.slane %v1177, 7
    %v1181 = vsel %vm525, %v1176, %v1180
    %v1183 = vsub.f32 %v1100, %v1181
    %v1184 = vmul.f32 %v1039, %v1172
    %v1185 = vmul.f32 %v1095, %v1173
    %v1186 = vmul.f32 %v1041, %v1172
    %v1187 = vmul.f32 %v1097, %v1173
    %v1189 = vperm.slane %v1183, 0
    %v1190 = vperm.slane %v1183, 1
    %v1193 = vadd.f32 %v1184, %v1189
    %v1194 = vadd.f32 %v1185, %v1190
    %v1195 = vadd.f32 %v1186, %v1189
    %v1196 = vadd.f32 %v1187, %v1190
    %v1197 = vmax.f32 %v1193, 0.0
    %v1198 = vmax.f32 %v1194, 0.0
    %v1199 = vmax.f32 %v1195, 0.0
    %v1200 = vmax.f32 %v1196, 0.0
    %v1201 = vmul.f32 %v1197, %v130
    %v1202 = vmul.f32 %v1198, %v130
    %v1203 = vmul.f32 %v1199, %v131
    %v1204 = vmul.f32 %v1200, %v131
    %v1205 = vpack.c.bf16 %v1203, %v1201
    %v1206 = vpack.c.bf16 %v1204, %v1202
    %v1207 = vld [vmem:[#allocation11] sm:$0xf]
    %v1208 = vld [vmem:[#allocation11 + $0x4] sm:$0xf]
    %v1209 = vld [vmem:[#allocation11 + $0x8] sm:$0xf]
    %v1210 = vld [vmem:[#allocation11 + $0xc] sm:$0xf]
    %v1211 = vld [vmem:[#allocation11 + $0x10] sm:$0xf]
    %v1212 = vld [vmem:[#allocation11 + $0x14] sm:$0xf]
    %v1213 = vld [vmem:[#allocation11 + $0x18] sm:$0xf]
    %v1214 = vld [vmem:[#allocation11 + $0x1c] sm:$0xf]
    %v1215 = vld [vmem:[#allocation11 + $0x20] sm:$0xf]
    %v1216 = vld [vmem:[#allocation11 + $0x24] sm:$0xf]
    %v1217 = vld [vmem:[#allocation11 + $0x28] sm:$0xf]
    %v1218 = vld [vmem:[#allocation11 + $0x2c] sm:$0xf]
    %v1219 = vld [vmem:[#allocation11 + $0x30] sm:$0xf]
    %v1220 = vld [vmem:[#allocation11 + $0x34] sm:$0xf]
    %v1221 = vld [vmem:[#allocation11 + $0x38] sm:$0xf]
    %v1222 = vld [vmem:[#allocation11 + $0x3c] sm:$0xf]
    %v1223 = vld [vmem:[#allocation11 + $0x40] sm:$0xf]
    %v1224 = vld [vmem:[#allocation11 + $0x44] sm:$0xf]
    %v1225 = vld [vmem:[#allocation11 + $0x48] sm:$0xf]
    %v1226 = vld [vmem:[#allocation11 + $0x4c] sm:$0xf]
    %v1227 = vld [vmem:[#allocation11 + $0x50] sm:$0xf]
    %v1228 = vld [vmem:[#allocation11 + $0x54] sm:$0xf]
    %v1229 = vld [vmem:[#allocation11 + $0x58] sm:$0xf]
    %v1230 = vld [vmem:[#allocation11 + $0x5c] sm:$0xf]
    %v1231 = vld [vmem:[#allocation11 + $0x60] sm:$0xf]
    %v1232 = vld [vmem:[#allocation11 + $0x64] sm:$0xf]
    %v1233 = vld [vmem:[#allocation11 + $0x68] sm:$0xf]
    %v1234 = vld [vmem:[#allocation11 + $0x6c] sm:$0xf]
    %v1235 = vld [vmem:[#allocation11 + $0x70] sm:$0xf]
    %v1236 = vld [vmem:[#allocation11 + $0x74] sm:$0xf]
    %v1237 = vld [vmem:[#allocation11 + $0x78] sm:$0xf]
    %v1238 = vld [vmem:[#allocation11 + $0x7c] sm:$0xf]
    %v1239 = vld [vmem:[%s8] sm:$0x1]
    %v1241 = vperm.slane %v1239, 0
    %v1275 = vunpack.c.l.b16 %v1207
    %v1276 = vunpack.c.l.b16 %v1208
    %v1277 = vunpack.c.l.b16 %v1209
    %v1278 = vunpack.c.l.b16 %v1210
    %v1279 = vunpack.c.l.b16 %v1211
    %v1280 = vunpack.c.l.b16 %v1212
    %v1281 = vunpack.c.l.b16 %v1213
    %v1282 = vunpack.c.l.b16 %v1214
    %v1283 = vunpack.c.l.b16 %v1215
    %v1284 = vunpack.c.l.b16 %v1216
    %v1285 = vunpack.c.l.b16 %v1217
    %v1286 = vunpack.c.l.b16 %v1218
    %v1287 = vunpack.c.l.b16 %v1219
    %v1288 = vunpack.c.l.b16 %v1220
    %v1289 = vunpack.c.l.b16 %v1221
    %v1290 = vunpack.c.l.b16 %v1222
    %v1291 = vunpack.c.l.b16 %v1223
    %v1292 = vunpack.c.l.b16 %v1224
    %v1293 = vunpack.c.l.b16 %v1225
    %v1294 = vunpack.c.l.b16 %v1226
    %v1295 = vunpack.c.l.b16 %v1227
    %v1296 = vunpack.c.l.b16 %v1228
    %v1297 = vunpack.c.l.b16 %v1229
    %v1298 = vunpack.c.l.b16 %v1230
    %v1299 = vunpack.c.l.b16 %v1231
    %v1300 = vunpack.c.l.b16 %v1232
    %v1301 = vunpack.c.l.b16 %v1233
    %v1302 = vunpack.c.l.b16 %v1234
    %v1303 = vunpack.c.l.b16 %v1235
    %v1304 = vunpack.c.l.b16 %v1236
    %v1305 = vunpack.c.l.b16 %v1237
    %v1306 = vunpack.c.l.b16 %v1238
    %v1307 = vpack.c.b16 %v1276, %v1275
    %v1308 = vpack.c.b16 %v1278, %v1277
    %v1309 = vpack.c.b16 %v1280, %v1279
    %v1310 = vpack.c.b16 %v1282, %v1281
    %v1311 = vpack.c.b16 %v1284, %v1283
    %v1312 = vpack.c.b16 %v1286, %v1285
    %v1313 = vpack.c.b16 %v1288, %v1287
    %v1314 = vpack.c.b16 %v1290, %v1289
    %v1315 = vpack.c.b16 %v1292, %v1291
    %v1316 = vpack.c.b16 %v1294, %v1293
    %v1317 = vpack.c.b16 %v1296, %v1295
    %v1318 = vpack.c.b16 %v1298, %v1297
    %v1319 = vpack.c.b16 %v1300, %v1299
    %v1320 = vpack.c.b16 %v1302, %v1301
    %v1321 = vpack.c.b16 %v1304, %v1303
    %v1322 = vpack.c.b16 %v1306, %v1305
    %1339 = vmatpush.bf16.msra.mxu0 %v1314
    %1340 = vmatpush.bf16.msra.mxu0 %v1313
    %1341 = vmatpush.bf16.msra.mxu0 %v1312
    %1342 = vmatpush.bf16.msra.mxu0 %v1311
    %1343 = vmatpush.bf16.msra.mxu0 %v1310
    %1344 = vmatpush.bf16.msra.mxu0 %v1309
    %1345 = vmatpush.bf16.msra.mxu0 %v1308
    %1346 = vmatpush.bf16.msra.mxu0 %v1307
    %1347 = vmatmul.bf16.gmra.mxu0 %v1205
    %v1348 = vpop.f32.mrf.mxu0
    %v1349 = vadd.f32 %v1241, %v1348
    %v1350 = vpop.f32.mrf.mxu0
    %v1351 = vadd.f32 %v1241, %v1350
    %1352 = vdwg.mxu0
    %1353 = vmatpush.bf16.msra.mxu0 %v1322
    %1354 = vmatpush.bf16.msra.mxu0 %v1321
    %1355 = vmatpush.bf16.msra.mxu0 %v1320
    %1356 = vmatpush.bf16.msra.mxu0 %v1319
    %1357 = vmatpush.bf16.msra.mxu0 %v1318
    %1358 = vmatpush.bf16.msra.mxu0 %v1317
    %1359 = vmatpush.bf16.msra.mxu0 %v1316
    %1360 = vmatpush.bf16.msra.mxu0 %v1315
    %1361 = vmatmul.bf16.gmra.mxu0 %v1206
    %v1362 = vpop.f32.mrf.mxu0
    %v1363 = vadd.f32 %v1349, %v1362
    %v1364 = vpop.f32.mrf.mxu0
    %v1365 = vadd.f32 %v1351, %v1364
    %1366 = vdwg.mxu0
    %1367 = vst [vmem:[#allocation13] sm:$0xff] %v1363
    %1368 = vst [vmem:[#allocation13 + $0x8] sm:$0xff] %v1365
    // Predicated region
    $region62: #{tpu_custom_call.1} parent=1 // pred_check
      _
    $region63: #{tpu_custom_call.1} parent=1 // pred_check_branch
      %1370 = sbr.rel (0) target = $region65
    $region64: #{tpu_custom_call.1} parent=1 // pred_region
      %1372 = vsyncadd [#allocation4], 0
      %s1373 = sshll.u32 [#allocation13], 4
      %s1374 = int_to_ptr.vmem [resolvable:$true] %s1373
      %s1375 = sshll.u32 %s9, 4
      %s1376 = int_to_ptr.hbm [resolvable:$true] %s1375
      %1381 = dma.vmem_to_hbm [thread:$0]  %s1374, 256, %s1376, [#allocation4], 128, 128, 8
    $region65: #{tpu_custom_call.1} parent=1 // pred_fallthru
      _
    // Predicated region
    $region66: #{tpu_custom_call.1} parent=1 // pred_check
      _
    $region67: #{tpu_custom_call.1} parent=1 // pred_check_branch
      %1383 = sbr.rel (0) target = $region69
    $region68: #{tpu_custom_call.1} parent=1 // pred_region
      %1385 = dma.done [#allocation4], 256
    $region69: #{tpu_custom_call.1} parent=1 // pred_fallthru
      _
    %1386 = vsyncpa [#allocation3], 1
    %1387 = vsyncpa [#allocation6], 1
    %1388 = vsyncpa [#allocation9], 1
    %1389 = vsyncpa [#allocation12], 1
    %1390 = vsyncpa [#allocation4], 1

</llo_original>
